<compile_context>
chip_gen: v7x
topology: tpu7x:2x2x1
jax: 0.10.0
libtpu: 0.0.40
codegen_flags: <defaults>
</compile_context>

<pallas_src>
import functools

import jax
import jax.numpy as jnp
from jax.experimental import pallas as pl
from jax.experimental.pallas import tpu as pltpu


def _round_up(x, m):
    return (x + m - 1) // m * m


def policy_mlp_kernel(xT_ref, w1_ref, b1_ref, w2_ref, b2_ref, w3_ref, b3_ref, out_ref):
    # xT_ref: (state_dim, TB)      bf16   (batch on the 128-lane axis -> lane-dense)
    # wN_ref: (out_feat, in_feat)  bf16   (PyTorch layout, VMEM-resident across grid steps)
    # bN_ref: (out_feat, 1)        f32
    # out_ref:(action_dim, TB)     f32    (lane-dense stores)
    xT = xT_ref[...]                                                   # (S, TB) bf16

    h1 = jnp.dot(w1_ref[...], xT, preferred_element_type=jnp.float32)  # (H, TB) f32
    h1 = jnp.maximum(h1 + b1_ref[...], 0.0)                            # bias + ReLU in f32

    h2 = jnp.dot(w2_ref[...], h1.astype(jnp.bfloat16),
                 preferred_element_type=jnp.float32)                   # (H, TB) f32
    h2 = jnp.maximum(h2 + b2_ref[...], 0.0)

    a = jnp.dot(w3_ref[...], h2.astype(jnp.bfloat16),
                preferred_element_type=jnp.float32)                    # (A, TB) f32
    out_ref[...] = jnp.tanh(a + b3_ref[...]).astype(out_ref.dtype)


@functools.partial(jax.jit, static_argnames=("block_batch",))
def policy_network_forward(x, params, block_batch=4096):
    """x: [B, state_dim] float.  params: PyTorch-layout weights w[out,in], biases b[out]."""
    w1, b1, w2, b2, w3, b3 = (params[k] for k in ("w1", "b1", "w2", "b2", "w3", "b3"))
    B, state_dim = x.shape
    hidden = w1.shape[0]
    action_dim = w3.shape[0]

    # bf16 MXU operands (accumulation stays f32 in-kernel); biases stay f32 as (out, 1).
    w1b, w2b, w3b = (w.astype(jnp.bfloat16) for w in (w1, w2, w3))
    b1c, b2c, b3c = (b.reshape(-1, 1).astype(jnp.float32) for b in (b1, b2, b3))

    # Batch tile: forced to a multiple of 128 (lane-dense), collapses to one grid step for
    # small B; pad batch to a whole number of tiles.
    tb = _round_up(max(128, min(block_batch, B)), 128)
    b_pad = _round_up(B, tb)
    grid = (b_pad // tb,)

    # Lane-dense x layout: (state_dim, B_pad), batch on the lane axis.
    xT = x.astype(jnp.bfloat16).T                                       # (S, B)
    if b_pad != B:
        xT = jnp.pad(xT, ((0, 0), (0, b_pad - B)))

    resident = lambda i: (0, 0)  # constant index_map -> DMA'd once, stays in VMEM

    flops = 2 * b_pad * (state_dim * hidden + hidden * hidden + hidden * action_dim)
    bytes_accessed = (
        xT.size * xT.dtype.itemsize
        + sum(a.size * a.dtype.itemsize for a in (w1b, w2b, w3b, b1c, b2c, b3c))
        + b_pad * action_dim * 4
    )

    out_t = pl.pallas_call(
        policy_mlp_kernel,
        out_shape=jax.ShapeDtypeStruct((action_dim, b_pad), jnp.float32),
        grid=grid,
        in_specs=[
            pl.BlockSpec((state_dim, tb), lambda i: (0, i)),     # x^T: batch-tiled on lanes
            pl.BlockSpec((hidden, state_dim), resident),         # w1
            pl.BlockSpec((hidden, 1), resident),                 # b1
            pl.BlockSpec((hidden, hidden), resident),            # w2
            pl.BlockSpec((hidden, 1), resident),                 # b2
            pl.BlockSpec((action_dim, hidden), resident),        # w3
            pl.BlockSpec((action_dim, 1), resident),             # b3
        ],
        out_specs=pl.BlockSpec((action_dim, tb), lambda i: (0, i)),
        compiler_params=pltpu.CompilerParams(
            dimension_semantics=("parallel",),
            vmem_limit_bytes=32 * 1024 * 1024,
        ),
        cost_estimate=pl.CostEstimate(
            flops=flops,
            transcendentals=b_pad * action_dim,
            bytes_accessed=bytes_accessed,
        ),
    )(xT, w1b, b1c, w2b, b2c, w3b, b3c)

    # (action_dim, B_pad) -> (B, action_dim): drop padding, transpose the tiny output outside
    # (kept only to preserve the PyTorch return layout; consumers that accept (A, B) can skip it).
    return out_t[:, :B].T


def init_policy_params(key, state_dim, action_dim, hidden_size=64):
    """nn.Linear-style init: w ~ U(-1/sqrt(in), 1/sqrt(in)) with PyTorch [out, in] layout."""
    keys = jax.random.split(key, 6)

    def linear(kw, kb, fan_in, fan_out):
        bound = 1.0 / jnp.sqrt(jnp.float32(fan_in))
        w = jax.random.uniform(kw, (fan_out, fan_in), jnp.float32, -bound, bound)
        b = jax.random.uniform(kb, (fan_out,), jnp.float32, -bound, bound)
        return w, b

    w1, b1 = linear(keys[0], keys[1], state_dim, hidden_size)
    w2, b2 = linear(keys[2], keys[3], hidden_size, hidden_size)
    w3, b3 = linear(keys[4], keys[5], hidden_size, action_dim)
    return {"w1": w1, "b1": b1, "w2": w2, "b2": b2, "w3": w3, "b3": b3}


if __name__ == "__main__":
    key = jax.random.PRNGKey(0)
    k_param, k_x = jax.random.split(key)

    # batch=500 (not a multiple of 128) exercises the padded-tail path; tb rounds up to 512,
    # so the whole forward runs in a single grid step.
    batch, state_dim, action_dim, hidden = 500, 16, 8, 64
    params = init_policy_params(k_param, state_dim, action_dim, hidden)
    x = jax.random.normal(k_x, (batch, state_dim), jnp.float32)

    action = policy_network_forward(x, params)
    action = jax.block_until_ready(action)
    assert action.shape == (batch, action_dim)

    # Reference 1: same bf16-operand / f32-accumulate math in plain JAX (tight tolerance).
    def ref_bf16(x, p):
        xb = x.astype(jnp.bfloat16)
        h1 = jnp.maximum(
            jnp.dot(xb, p["w1"].astype(jnp.bfloat16).T,
                    preferred_element_type=jnp.float32) + p["b1"], 0.0)
        h2 = jnp.maximum(
            jnp.dot(h1.astype(jnp.bfloat16), p["w2"].astype(jnp.bfloat16).T,
                    preferred_element_type=jnp.float32) + p["b2"], 0.0)
        return jnp.tanh(
            jnp.dot(h2.astype(jnp.bfloat16), p["w3"].astype(jnp.bfloat16).T,
                    preferred_element_type=jnp.float32) + p["b3"])

    # Reference 2: full-f32 forward (exact PyTorch semantics), loose tol for bf16 MXU operands.
    def ref_f32(x, p):
        h1 = jnp.maximum(x @ p["w1"].T + p["b1"], 0.0)
        h2 = jnp.maximum(h1 @ p["w2"].T + p["b2"], 0.0)
        return jnp.tanh(h2 @ p["w3"].T + p["b3"])

    assert jnp.allclose(action, ref_bf16(x, params), atol=2e-3, rtol=2e-3)
    assert jnp.allclose(action, ref_f32(x, params), atol=3e-2, rtol=3e-2)

    print("KERNEL_OK")
</pallas_src>

<mosaic_0001>
module attributes {stable_mosaic.version = 11 : i64} {
  func.func @policy_mlp_kernel(%arg0: i32, %arg1: memref<16x512xbf16, #tpu.memory_space<vmem>>, %arg2: memref<64x16xbf16, #tpu.memory_space<vmem>>, %arg3: memref<64x1xf32, #tpu.memory_space<vmem>>, %arg4: memref<64x64xbf16, #tpu.memory_space<vmem>>, %arg5: memref<64x1xf32, #tpu.memory_space<vmem>>, %arg6: memref<8x64xbf16, #tpu.memory_space<vmem>>, %arg7: memref<8x1xf32, #tpu.memory_space<vmem>>, %arg8: memref<8x512xf32, #tpu.memory_space<vmem>>) attributes {dimension_semantics = [#tpu.dimension_semantics<parallel>], iteration_bounds = array<i64: 1>, scalar_prefetch = 0 : i64, scratch_operands = 0 : i64, tpu.core_type = #tpu.core_type<tc>, window_params = [{transform_indices = @transform_0, window_bounds = array<i64: 16, 512>}, {pipeline_mode = #tpu.pipeline_mode<synchronous>, transform_indices = @transform_1, window_bounds = array<i64: 64, 16>}, {pipeline_mode = #tpu.pipeline_mode<synchronous>, transform_indices = @transform_2, window_bounds = array<i64: 64, 1>}, {pipeline_mode = #tpu.pipeline_mode<synchronous>, transform_indices = @transform_3, window_bounds = array<i64: 64, 64>}, {pipeline_mode = #tpu.pipeline_mode<synchronous>, transform_indices = @transform_4, window_bounds = array<i64: 64, 1>}, {pipeline_mode = #tpu.pipeline_mode<synchronous>, transform_indices = @transform_5, window_bounds = array<i64: 8, 64>}, {pipeline_mode = #tpu.pipeline_mode<synchronous>, transform_indices = @transform_6, window_bounds = array<i64: 8, 1>}, {transform_indices = @transform_7, window_bounds = array<i64: 8, 512>}]} {
    %c0 = arith.constant 0 : index
    %c0_0 = arith.constant 0 : index
    %0 = vector.load %arg1[%c0, %c0_0] : memref<16x512xbf16, #tpu.memory_space<vmem>>, vector<16x512xbf16>
    %c0_1 = arith.constant 0 : index
    %c0_2 = arith.constant 0 : index
    %1 = vector.load %arg2[%c0_1, %c0_2] : memref<64x16xbf16, #tpu.memory_space<vmem>>, vector<64x16xbf16>
    %cst = arith.constant dense<0.000000e+00> : vector<64x512xf32>
    %2 = tpu.matmul %1, %0, %cst {dimension_numbers = #tpu.dot_dimension_numbers<[1], [0], [0], [1], [0, 0, 1, 1], [], []>} : vector<64x16xbf16>, vector<16x512xbf16>, vector<64x512xf32> -> vector<64x512xf32>
    %c0_3 = arith.constant 0 : index
    %c0_4 = arith.constant 0 : index
    %3 = vector.load %arg3[%c0_3, %c0_4] : memref<64x1xf32, #tpu.memory_space<vmem>>, vector<64x1xf32>
    %4 = vector.broadcast %3 : vector<64x1xf32> to vector<64x512xf32>
    %5 = arith.addf %2, %4 : vector<64x512xf32>
    %cst_5 = arith.constant 0.000000e+00 : f32
    %6 = vector.broadcast %cst_5 : f32 to vector<64x512xf32>
    %7 = arith.maximumf %5, %6 : vector<64x512xf32>
    %c0_6 = arith.constant 0 : index
    %c0_7 = arith.constant 0 : index
    %8 = vector.load %arg4[%c0_6, %c0_7] : memref<64x64xbf16, #tpu.memory_space<vmem>>, vector<64x64xbf16>
    %9 = arith.truncf %7 : vector<64x512xf32> to vector<64x512xbf16>
    %cst_8 = arith.constant dense<0.000000e+00> : vector<64x512xf32>
    %10 = tpu.matmul %8, %9, %cst_8 {dimension_numbers = #tpu.dot_dimension_numbers<[1], [0], [0], [1], [0, 0, 1, 1], [], []>} : vector<64x64xbf16>, vector<64x512xbf16>, vector<64x512xf32> -> vector<64x512xf32>
    %c0_9 = arith.constant 0 : index
    %c0_10 = arith.constant 0 : index
    %11 = vector.load %arg5[%c0_9, %c0_10] : memref<64x1xf32, #tpu.memory_space<vmem>>, vector<64x1xf32>
    %12 = vector.broadcast %11 : vector<64x1xf32> to vector<64x512xf32>
    %13 = arith.addf %10, %12 : vector<64x512xf32>
    %cst_11 = arith.constant 0.000000e+00 : f32
    %14 = vector.broadcast %cst_11 : f32 to vector<64x512xf32>
    %15 = arith.maximumf %13, %14 : vector<64x512xf32>
    %c0_12 = arith.constant 0 : index
    %c0_13 = arith.constant 0 : index
    %16 = vector.load %arg6[%c0_12, %c0_13] : memref<8x64xbf16, #tpu.memory_space<vmem>>, vector<8x64xbf16>
    %17 = arith.truncf %15 : vector<64x512xf32> to vector<64x512xbf16>
    %cst_14 = arith.constant dense<0.000000e+00> : vector<8x512xf32>
    %18 = tpu.matmul %16, %17, %cst_14 {dimension_numbers = #tpu.dot_dimension_numbers<[1], [0], [0], [1], [0, 0, 1, 1], [], []>} : vector<8x64xbf16>, vector<64x512xbf16>, vector<8x512xf32> -> vector<8x512xf32>
    %c0_15 = arith.constant 0 : index
    %c0_16 = arith.constant 0 : index
    %19 = vector.load %arg7[%c0_15, %c0_16] : memref<8x1xf32, #tpu.memory_space<vmem>>, vector<8x1xf32>
    %20 = vector.broadcast %19 : vector<8x1xf32> to vector<8x512xf32>
    %21 = arith.addf %18, %20 : vector<8x512xf32>
    %22 = math.tanh %21 : vector<8x512xf32>
    %c0_17 = arith.constant 0 : index
    %c0_18 = arith.constant 0 : index
    %23 = vector.load %arg8[%c0_17, %c0_18] : memref<8x512xf32, #tpu.memory_space<vmem>>, vector<8x512xf32>
    tpu.vector_store %arg8[%c0_17, %c0_18], %22 {strides = array<i32>} : memref<8x512xf32, #tpu.memory_space<vmem>>, vector<8x512xf32>,
    return
  }
  func.func @transform_0(%arg0: i32) -> (i32, i32) {
    %c0_i32 = arith.constant 0 : i32
    %c0_i32_0 = arith.constant 0 : i32
    return %c0_i32, %arg0 : i32, i32
  }
  func.func @transform_1(%arg0: i32) -> (i32, i32) {
    %c0_i32 = arith.constant 0 : i32
    %c0_i32_0 = arith.constant 0 : i32
    %c0_i32_1 = arith.constant 0 : i32
    return %c0_i32, %c0_i32_0 : i32, i32
  }
  func.func @transform_2(%arg0: i32) -> (i32, i32) {
    %c0_i32 = arith.constant 0 : i32
    %c0_i32_0 = arith.constant 0 : i32
    %c0_i32_1 = arith.constant 0 : i32
    return %c0_i32, %c0_i32_0 : i32, i32
  }
  func.func @transform_3(%arg0: i32) -> (i32, i32) {
    %c0_i32 = arith.constant 0 : i32
    %c0_i32_0 = arith.constant 0 : i32
    %c0_i32_1 = arith.constant 0 : i32
    return %c0_i32, %c0_i32_0 : i32, i32
  }
  func.func @transform_4(%arg0: i32) -> (i32, i32) {
    %c0_i32 = arith.constant 0 : i32
    %c0_i32_0 = arith.constant 0 : i32
    %c0_i32_1 = arith.constant 0 : i32
    return %c0_i32, %c0_i32_0 : i32, i32
  }
  func.func @transform_5(%arg0: i32) -> (i32, i32) {
    %c0_i32 = arith.constant 0 : i32
    %c0_i32_0 = arith.constant 0 : i32
    %c0_i32_1 = arith.constant 0 : i32
    return %c0_i32, %c0_i32_0 : i32, i32
  }
  func.func @transform_6(%arg0: i32) -> (i32, i32) {
    %c0_i32 = arith.constant 0 : i32
    %c0_i32_0 = arith.constant 0 : i32
    %c0_i32_1 = arith.constant 0 : i32
    return %c0_i32, %c0_i32_0 : i32, i32
  }
  func.func @transform_7(%arg0: i32) -> (i32, i32) {
    %c0_i32 = arith.constant 0 : i32
    %c0_i32_0 = arith.constant 0 : i32
    return %c0_i32, %arg0 : i32, i32
  }
}

</mosaic_0001>

<llo_original>
// kernel: policy_network_forward.1
$region0: #{policy_network_forward.1}
  #allocation0 [shape = 'u32[]', space=smem, size = 0x4, offset = 0x4, fixed_abs, tag = 'smem constant byte address 0x4 - core index']
  #allocation1 [shape = 'u32[144,128]{1,0:T(1,128)}', space=vmem, size = 0x12000, scoped, tag = 'internal scratch']
  %s0 = inlined_call_operand.vmem [shape: bf16[16,512], index: 0, kind: input, shape index: {}]
  %s1 = inlined_call_operand.vmem [shape: bf16[64,16], index: 1, kind: input, shape index: {}]
  %s2 = inlined_call_operand.vmem [shape: f32[64,1], index: 2, kind: input, shape index: {}]
  %s3 = inlined_call_operand.vmem [shape: bf16[64,64], index: 3, kind: input, shape index: {}]
  %s4 = inlined_call_operand.vmem [shape: f32[64,1], index: 4, kind: input, shape index: {}]
  %s5 = inlined_call_operand.vmem [shape: bf16[8,64], index: 5, kind: input, shape index: {}]
  %s6 = inlined_call_operand.vmem [shape: f32[8,1], index: 6, kind: input, shape index: {}]
  %s7 = inlined_call_operand.vmem [shape: f32[8,512], index: 7, kind: output, shape index: {}]
  %s8 = sld [smem:[#allocation0]]
  $region38: #{policy_network_forward.1} parent=0
    _
  %s10 = ssub.s32 1, %s8
  %s11 = scalar_select 0, %s10, %s8
  // Predicated region
  $region2: #{policy_network_forward.1} parent=0 // pred_check
    _
  $region3: #{policy_network_forward.1} parent=0 // pred_check_branch
    %13 = sbr.rel (0) target = $region5
  $region4: #{policy_network_forward.1} parent=0 // pred_region
    _
  $region5: #{policy_network_forward.1} parent=0 // pred_fallthru
    _
  // Predicated region
  $region6: #{policy_network_forward.1} parent=0 // pred_check
    _
  $region7: #{policy_network_forward.1} parent=0 // pred_check_branch
    %15 = sbr.rel (0) target = $region9
  $region8: #{policy_network_forward.1} parent=0 // pred_region
    _
  $region9: #{policy_network_forward.1} parent=0 // pred_fallthru
    _
  // Predicated region
  $region10: #{policy_network_forward.1} parent=0 // pred_check
    _
  $region11: #{policy_network_forward.1} parent=0 // pred_check_branch
    %17 = sbr.rel (0) target = $region13
  $region12: #{policy_network_forward.1} parent=0 // pred_region
    _
  $region13: #{policy_network_forward.1} parent=0 // pred_fallthru
    _
  // Predicated region
  $region14: #{policy_network_forward.1} parent=0 // pred_check
    _
  $region15: #{policy_network_forward.1} parent=0 // pred_check_branch
    %19 = sbr.rel (0) target = $region17
  $region16: #{policy_network_forward.1} parent=0 // pred_region
    _
  $region17: #{policy_network_forward.1} parent=0 // pred_fallthru
    _
  // Predicated region
  $region18: #{policy_network_forward.1} parent=0 // pred_check
    _
  $region19: #{policy_network_forward.1} parent=0 // pred_check_branch
    %21 = sbr.rel (0) target = $region21
  $region20: #{policy_network_forward.1} parent=0 // pred_region
    _
  $region21: #{policy_network_forward.1} parent=0 // pred_fallthru
    _
  // Predicated region
  $region22: #{policy_network_forward.1} parent=0 // pred_check
    _
  $region23: #{policy_network_forward.1} parent=0 // pred_check_branch
    %23 = sbr.rel (0) target = $region25
  $region24: #{policy_network_forward.1} parent=0 // pred_region
    _
  $region25: #{policy_network_forward.1} parent=0 // pred_fallthru
    _
  // Predicated region
  $region26: #{policy_network_forward.1} parent=0 // pred_check
    _
  $region27: #{policy_network_forward.1} parent=0 // pred_check_branch
    %25 = sbr.rel (0) target = $region29
  $region28: #{policy_network_forward.1} parent=0 // pred_region
    _
  $region29: #{policy_network_forward.1} parent=0 // pred_fallthru
    _
  %v27 = vld [vmem:[%s0] sm:$0xff]
  %v28 = vld [vmem:[%s0 + $0x8] sm:$0xff]
  %v29 = vld [vmem:[%s0 + $0x10] sm:$0xff]
  %v30 = vld [vmem:[%s0 + $0x18] sm:$0xff]
  %v31 = vld [vmem:[%s1] sm:$0xf]
  %v32 = vld [vmem:[%s1 + $0x4] sm:$0xf]
  %v33 = vld [vmem:[%s1 + $0x8] sm:$0xf]
  %v34 = vld [vmem:[%s1 + $0xc] sm:$0xf]
  %v35 = vld [vmem:[%s1 + $0x10] sm:$0xf]
  %v36 = vld [vmem:[%s1 + $0x14] sm:$0xf]
  %v37 = vld [vmem:[%s1 + $0x18] sm:$0xf]
  %v38 = vld [vmem:[%s1 + $0x1c] sm:$0xf]
  %v39 = vld [vmem:[%s2] sm:$0xff]
  %v40 = vld [vmem:[%s2 + $0x8] sm:$0xff]
  %v41 = vld [vmem:[%s2 + $0x10] sm:$0xff]
  %v42 = vld [vmem:[%s2 + $0x18] sm:$0xff]
  %v43 = vld [vmem:[%s2 + $0x20] sm:$0xff]
  %v44 = vld [vmem:[%s2 + $0x28] sm:$0xff]
  %v45 = vld [vmem:[%s2 + $0x30] sm:$0xff]
  %v46 = vld [vmem:[%s2 + $0x38] sm:$0xff]
  %48 = vset.pattern.permute.xlu0 0
  %49 = vperm.xlu0 %48, %v39
  %v50 = vpop.permute.xlu0 %49
  %53 = vset.pattern.permute.xlu0 0
  %54 = vperm.xlu0 %53, %v40
  %v55 = vpop.permute.xlu0 %54
  %58 = vset.pattern.permute.xlu0 0
  %59 = vperm.xlu0 %58, %v41
  %v60 = vpop.permute.xlu0 %59
  %63 = vset.pattern.permute.xlu0 0
  %64 = vperm.xlu0 %63, %v42
  %v65 = vpop.permute.xlu0 %64
  %68 = vset.pattern.permute.xlu0 0
  %69 = vperm.xlu0 %68, %v43
  %v70 = vpop.permute.xlu0 %69
  %73 = vset.pattern.permute.xlu0 0
  %74 = vperm.xlu0 %73, %v44
  %v75 = vpop.permute.xlu0 %74
  %78 = vset.pattern.permute.xlu0 0
  %79 = vperm.xlu0 %78, %v45
  %v80 = vpop.permute.xlu0 %79
  %83 = vset.pattern.permute.xlu0 0
  %84 = vperm.xlu0 %83, %v46
  %v85 = vpop.permute.xlu0 %84
  %v95 = vunpack.c.l.b16 %v31
  %v96 = vunpack.c.l.b16 %v32
  %v97 = vunpack.c.l.b16 %v33
  %v98 = vunpack.c.l.b16 %v34
  %v99 = vunpack.c.l.b16 %v35
  %v100 = vunpack.c.l.b16 %v36
  %v101 = vunpack.c.l.b16 %v37
  %v102 = vunpack.c.l.b16 %v38
  %v103 = vpack.c.b16 %v96, %v95
  %v104 = vpack.c.b16 %v98, %v97
  %v105 = vpack.c.b16 %v100, %v99
  %v106 = vpack.c.b16 %v102, %v101
  %v111 = vunpack.c.l.b16 %v27
  %v112 = vunpack.c.h.b16 %v27
  %v113 = vunpack.c.l.b16 %v28
  %v114 = vunpack.c.h.b16 %v28
  %v115 = vunpack.c.l.b16 %v29
  %v116 = vunpack.c.h.b16 %v29
  %v117 = vunpack.c.l.b16 %v30
  %v118 = vunpack.c.h.b16 %v30
  %v119 = vpack.c.b16 %v115, %v111
  %v120 = vpack.c.b16 %v116, %v112
  %v121 = vpack.c.b16 %v117, %v113
  %v122 = vpack.c.b16 %v118, %v114
  %vm127 = vcmask 130048
  %v129 = vsel %vm127, %v103, 0
  %v132 = vsel %vm127, %v104, 0
  %v135 = vsel %vm127, %v105, 0
  %v138 = vsel %vm127, %v106, 0
  %140 = vmatprep.subr.bf16.mxu0 %v120
  %141 = vmatpush1.bf16.msra.mxu0 %v119
  %142 = vmatprep.subr.bf16.mxu0 0
  %143 = vmatpush1.bf16.msra.mxu0 0
  %144 = vmatprep.subr.bf16.mxu0 0
  %145 = vmatpush1.bf16.msra.mxu0 0
  %146 = vmatprep.subr.bf16.mxu0 0
  %147 = vmatpush1.bf16.msra.mxu0 0
  %148 = vmatprep.subr.bf16.mxu0 0
  %149 = vmatpush1.bf16.msra.mxu0 0
  %150 = vmatprep.subr.bf16.mxu0 0
  %151 = vmatpush1.bf16.msra.mxu0 0
  %152 = vmatprep.subr.bf16.mxu0 0
  %153 = vmatpush1.bf16.msra.mxu0 0
  %154 = vmatprep.subr.bf16.mxu0 0
  %155 = vmatpush1.bf16.msra.mxu0 0
  %156 = vmatprep.subr.bf16.mxu0 0
  %157 = vmatpush1.bf16.msra.mxu0 0
  %158 = vmatprep.subr.bf16.mxu0 0
  %159 = vmatpush1.bf16.msra.mxu0 0
  %160 = vmatprep.subr.bf16.mxu0 0
  %161 = vmatpush1.bf16.msra.mxu0 0
  %162 = vmatprep.subr.bf16.mxu0 0
  %163 = vmatpush1.bf16.msra.mxu0 0
  %164 = vmatprep.subr.bf16.mxu0 0
  %165 = vmatpush1.bf16.msra.mxu0 0
  %166 = vmatprep.subr.bf16.mxu0 0
  %167 = vmatpush1.bf16.msra.mxu0 0
  %168 = vmatprep.subr.bf16.mxu0 0
  %169 = vmatpush1.bf16.msra.mxu0 0
  %170 = vmatprep.subr.bf16.mxu0 0
  %171 = vmatpush1.bf16.msra.mxu0 0
  %172 = vmatprep.mubr.bf16.mxu0 0
  %173 = vmatmul.mubr.bf16.gmra.mrb[0].mxu0 %v129
  %v174 = vpop.f32.mrb[0].mxu0
  %v175 = vadd.f32 %v50, %v174
  %v176 = vpop.f32.mrb[0].mxu0
  %v177 = vadd.f32 %v50, %v176
  %v178 = vpop.f32.mrb[0].mxu0
  %v179 = vadd.f32 %v55, %v178
  %v180 = vpop.f32.mrb[0].mxu0
  %v181 = vadd.f32 %v55, %v180
  %182 = vmatprep.mubr.bf16.mxu0 0
  %183 = vmatmul.mubr.bf16.gmra.mrb[0].mxu0 %v132
  %v184 = vpop.f32.mrb[0].mxu0
  %v185 = vadd.f32 %v60, %v184
  %v186 = vpop.f32.mrb[0].mxu0
  %v187 = vadd.f32 %v60, %v186
  %v188 = vpop.f32.mrb[0].mxu0
  %v189 = vadd.f32 %v65, %v188
  %v190 = vpop.f32.mrb[0].mxu0
  %v191 = vadd.f32 %v65, %v190
  %192 = vmatprep.mubr.bf16.mxu0 0
  %193 = vmatmul.mubr.bf16.gmra.mrb[0].mxu0 %v135
  %v194 = vpop.f32.mrb[0].mxu0
  %v195 = vadd.f32 %v70, %v194
  %v196 = vpop.f32.mrb[0].mxu0
  %v197 = vadd.f32 %v70, %v196
  %v198 = vpop.f32.mrb[0].mxu0
  %v199 = vadd.f32 %v75, %v198
  %v200 = vpop.f32.mrb[0].mxu0
  %v201 = vadd.f32 %v75, %v200
  %202 = vmatprep.mubr.bf16.mxu0 0
  %203 = vmatmul.mubr.bf16.gmra.mrb[0].mxu0 %v138
  %v204 = vpop.f32.mrb[0].mxu0
  %v205 = vadd.f32 %v80, %v204
  %v206 = vpop.f32.mrb[0].mxu0
  %v207 = vadd.f32 %v80, %v206
  %v208 = vpop.f32.mrb[0].mxu0
  %v209 = vadd.f32 %v85, %v208
  %v210 = vpop.f32.mrb[0].mxu0
  %v211 = vadd.f32 %v85, %v210
  %212 = vdwg.mxu0
  %213 = vmatprep.subr.bf16.mxu0 %v122
  %214 = vmatpush1.bf16.msra.mxu0 %v121
  %215 = vmatprep.subr.bf16.mxu0 0
  %216 = vmatpush1.bf16.msra.mxu0 0
  %217 = vmatprep.subr.bf16.mxu0 0
  %218 = vmatpush1.bf16.msra.mxu0 0
  %219 = vmatprep.subr.bf16.mxu0 0
  %220 = vmatpush1.bf16.msra.mxu0 0
  %221 = vmatprep.subr.bf16.mxu0 0
  %222 = vmatpush1.bf16.msra.mxu0 0
  %223 = vmatprep.subr.bf16.mxu0 0
  %224 = vmatpush1.bf16.msra.mxu0 0
  %225 = vmatprep.subr.bf16.mxu0 0
  %226 = vmatpush1.bf16.msra.mxu0 0
  %227 = vmatprep.subr.bf16.mxu0 0
  %228 = vmatpush1.bf16.msra.mxu0 0
  %229 = vmatprep.subr.bf16.mxu0 0
  %230 = vmatpush1.bf16.msra.mxu0 0
  %231 = vmatprep.subr.bf16.mxu0 0
  %232 = vmatpush1.bf16.msra.mxu0 0
  %233 = vmatprep.subr.bf16.mxu0 0
  %234 = vmatpush1.bf16.msra.mxu0 0
  %235 = vmatprep.subr.bf16.mxu0 0
  %236 = vmatpush1.bf16.msra.mxu0 0
  %237 = vmatprep.subr.bf16.mxu0 0
  %238 = vmatpush1.bf16.msra.mxu0 0
  %239 = vmatprep.subr.bf16.mxu0 0
  %240 = vmatpush1.bf16.msra.mxu0 0
  %241 = vmatprep.subr.bf16.mxu0 0
  %242 = vmatpush1.bf16.msra.mxu0 0
  %243 = vmatprep.subr.bf16.mxu0 0
  %244 = vmatpush1.bf16.msra.mxu0 0
  %245 = vmatprep.mubr.bf16.mxu0 0
  %246 = vmatmul.mubr.bf16.gmra.mrb[0].mxu0 %v129
  %v247 = vpop.f32.mrb[0].mxu0
  %v248 = vadd.f32 %v50, %v247
  %v249 = vpop.f32.mrb[0].mxu0
  %v250 = vadd.f32 %v50, %v249
  %v251 = vpop.f32.mrb[0].mxu0
  %v252 = vadd.f32 %v55, %v251
  %v253 = vpop.f32.mrb[0].mxu0
  %v254 = vadd.f32 %v55, %v253
  %255 = vmatprep.mubr.bf16.mxu0 0
  %256 = vmatmul.mubr.bf16.gmra.mrb[0].mxu0 %v132
  %v257 = vpop.f32.mrb[0].mxu0
  %v258 = vadd.f32 %v60, %v257
  %v259 = vpop.f32.mrb[0].mxu0
  %v260 = vadd.f32 %v60, %v259
  %v261 = vpop.f32.mrb[0].mxu0
  %v262 = vadd.f32 %v65, %v261
  %v263 = vpop.f32.mrb[0].mxu0
  %v264 = vadd.f32 %v65, %v263
  %265 = vmatprep.mubr.bf16.mxu0 0
  %266 = vmatmul.mubr.bf16.gmra.mrb[0].mxu0 %v135
  %v267 = vpop.f32.mrb[0].mxu0
  %v268 = vadd.f32 %v70, %v267
  %v269 = vpop.f32.mrb[0].mxu0
  %v270 = vadd.f32 %v70, %v269
  %v271 = vpop.f32.mrb[0].mxu0
  %v272 = vadd.f32 %v75, %v271
  %v273 = vpop.f32.mrb[0].mxu0
  %v274 = vadd.f32 %v75, %v273
  %275 = vmatprep.mubr.bf16.mxu0 0
  %276 = vmatmul.mubr.bf16.gmra.mrb[0].mxu0 %v138
  %v277 = vpop.f32.mrb[0].mxu0
  %v278 = vadd.f32 %v80, %v277
  %v279 = vpop.f32.mrb[0].mxu0
  %v280 = vadd.f32 %v80, %v279
  %v281 = vpop.f32.mrb[0].mxu0
  %v282 = vadd.f32 %v85, %v281
  %v283 = vpop.f32.mrb[0].mxu0
  %v284 = vadd.f32 %v85, %v283
  %285 = vdwg.mxu0
  %v286 = vmax.f32 %v175, 0.0
  %v287 = vmax.f32 %v177, 0.0
  %v288 = vmax.f32 %v248, 0.0
  %v289 = vmax.f32 %v250, 0.0
  %v290 = vmax.f32 %v179, 0.0
  %v291 = vmax.f32 %v181, 0.0
  %v292 = vmax.f32 %v252, 0.0
  %v293 = vmax.f32 %v254, 0.0
  %v294 = vmax.f32 %v185, 0.0
  %v295 = vmax.f32 %v187, 0.0
  %v296 = vmax.f32 %v258, 0.0
  %v297 = vmax.f32 %v260, 0.0
  %v298 = vmax.f32 %v189, 0.0
  %v299 = vmax.f32 %v191, 0.0
  %v300 = vmax.f32 %v262, 0.0
  %v301 = vmax.f32 %v264, 0.0
  %v302 = vmax.f32 %v195, 0.0
  %v303 = vmax.f32 %v197, 0.0
  %v304 = vmax.f32 %v268, 0.0
  %v305 = vmax.f32 %v270, 0.0
  %v306 = vmax.f32 %v199, 0.0
  %v307 = vmax.f32 %v201, 0.0
  %v308 = vmax.f32 %v272, 0.0
  %v309 = vmax.f32 %v274, 0.0
  %v310 = vmax.f32 %v205, 0.0
  %v311 = vmax.f32 %v207, 0.0
  %v312 = vmax.f32 %v278, 0.0
  %v313 = vmax.f32 %v280, 0.0
  %v314 = vmax.f32 %v209, 0.0
  %v315 = vmax.f32 %v211, 0.0
  %v316 = vmax.f32 %v282, 0.0
  %v317 = vmax.f32 %v284, 0.0
  %v318 = vld [vmem:[%s3] sm:$0xf]
  %v319 = vld [vmem:[%s3 + $0x4] sm:$0xf]
  %v320 = vld [vmem:[%s3 + $0x8] sm:$0xf]
  %v321 = vld [vmem:[%s3 + $0xc] sm:$0xf]
  %v322 = vld [vmem:[%s3 + $0x10] sm:$0xf]
  %v323 = vld [vmem:[%s3 + $0x14] sm:$0xf]
  %v324 = vld [vmem:[%s3 + $0x18] sm:$0xf]
  %v325 = vld [vmem:[%s3 + $0x1c] sm:$0xf]
  %v326 = vpack.c.bf16 %v290, %v286
  %v327 = vpack.c.bf16 %v291, %v287
  %v328 = vpack.c.bf16 %v292, %v288
  %v329 = vpack.c.bf16 %v293, %v289
  %v330 = vpack.c.bf16 %v298, %v294
  %v331 = vpack.c.bf16 %v299, %v295
  %v332 = vpack.c.bf16 %v300, %v296
  %v333 = vpack.c.bf16 %v301, %v297
  %v334 = vpack.c.bf16 %v306, %v302
  %v335 = vpack.c.bf16 %v307, %v303
  %v336 = vpack.c.bf16 %v308, %v304
  %v337 = vpack.c.bf16 %v309, %v305
  %v338 = vpack.c.bf16 %v314, %v310
  %v339 = vpack.c.bf16 %v315, %v311
  %v340 = vpack.c.bf16 %v316, %v312
  %v341 = vpack.c.bf16 %v317, %v313
  %v342 = vld [vmem:[%s4] sm:$0xff]
  %v343 = vld [vmem:[%s4 + $0x8] sm:$0xff]
  %v344 = vld [vmem:[%s4 + $0x10] sm:$0xff]
  %v345 = vld [vmem:[%s4 + $0x18] sm:$0xff]
  %v346 = vld [vmem:[%s4 + $0x20] sm:$0xff]
  %v347 = vld [vmem:[%s4 + $0x28] sm:$0xff]
  %v348 = vld [vmem:[%s4 + $0x30] sm:$0xff]
  %v349 = vld [vmem:[%s4 + $0x38] sm:$0xff]
  %351 = vset.pattern.permute.xlu0 0
  %352 = vperm.xlu0 %351, %v342
  %v353 = vpop.permute.xlu0 %352
  %356 = vset.pattern.permute.xlu0 0
  %357 = vperm.xlu0 %356, %v343
  %v358 = vpop.permute.xlu0 %357
  %361 = vset.pattern.permute.xlu0 0
  %362 = vperm.xlu0 %361, %v344
  %v363 = vpop.permute.xlu0 %362
  %366 = vset.pattern.permute.xlu0 0
  %367 = vperm.xlu0 %366, %v345
  %v368 = vpop.permute.xlu0 %367
  %371 = vset.pattern.permute.xlu0 0
  %372 = vperm.xlu0 %371, %v346
  %v373 = vpop.permute.xlu0 %372
  %376 = vset.pattern.permute.xlu0 0
  %377 = vperm.xlu0 %376, %v347
  %v378 = vpop.permute.xlu0 %377
  %381 = vset.pattern.permute.xlu0 0
  %382 = vperm.xlu0 %381, %v348
  %v383 = vpop.permute.xlu0 %382
  %386 = vset.pattern.permute.xlu0 0
  %387 = vperm.xlu0 %386, %v349
  %v388 = vpop.permute.xlu0 %387
  %v398 = vunpack.c.l.b16 %v318
  %v399 = vunpack.c.l.b16 %v319
  %v400 = vunpack.c.l.b16 %v320
  %v401 = vunpack.c.l.b16 %v321
  %v402 = vunpack.c.l.b16 %v322
  %v403 = vunpack.c.l.b16 %v323
  %v404 = vunpack.c.l.b16 %v324
  %v405 = vunpack.c.l.b16 %v325
  %v406 = vpack.c.b16 %v399, %v398
  %v407 = vpack.c.b16 %v401, %v400
  %v408 = vpack.c.b16 %v403, %v402
  %v409 = vpack.c.b16 %v405, %v404
  %vm410 = vcmask 523264
  %v412 = vsel %vm410, %v406, 0
  %v415 = vsel %vm410, %v407, 0
  %v418 = vsel %vm410, %v408, 0
  %v421 = vsel %vm410, %v409, 0
  %423 = vmatprep.subr.bf16.mxu0 %v327
  %424 = vmatpush1.bf16.msra.mxu0 %v326
  %425 = vmatprep.subr.bf16.mxu0 %v331
  %426 = vmatpush1.bf16.msra.mxu0 %v330
  %427 = vmatprep.subr.bf16.mxu0 %v335
  %428 = vmatpush1.bf16.msra.mxu0 %v334
  %429 = vmatprep.subr.bf16.mxu0 %v339
  %430 = vmatpush1.bf16.msra.mxu0 %v338
  %431 = vmatprep.subr.bf16.mxu0 0
  %432 = vmatpush1.bf16.msra.mxu0 0
  %433 = vmatprep.subr.bf16.mxu0 0
  %434 = vmatpush1.bf16.msra.mxu0 0
  %435 = vmatprep.subr.bf16.mxu0 0
  %436 = vmatpush1.bf16.msra.mxu0 0
  %437 = vmatprep.subr.bf16.mxu0 0
  %438 = vmatpush1.bf16.msra.mxu0 0
  %439 = vmatprep.subr.bf16.mxu0 0
  %440 = vmatpush1.bf16.msra.mxu0 0
  %441 = vmatprep.subr.bf16.mxu0 0
  %442 = vmatpush1.bf16.msra.mxu0 0
  %443 = vmatprep.subr.bf16.mxu0 0
  %444 = vmatpush1.bf16.msra.mxu0 0
  %445 = vmatprep.subr.bf16.mxu0 0
  %446 = vmatpush1.bf16.msra.mxu0 0
  %447 = vmatprep.subr.bf16.mxu0 0
  %448 = vmatpush1.bf16.msra.mxu0 0
  %449 = vmatprep.subr.bf16.mxu0 0
  %450 = vmatpush1.bf16.msra.mxu0 0
  %451 = vmatprep.subr.bf16.mxu0 0
  %452 = vmatpush1.bf16.msra.mxu0 0
  %453 = vmatprep.subr.bf16.mxu0 0
  %454 = vmatpush1.bf16.msra.mxu0 0
  %455 = vmatprep.mubr.bf16.mxu0 0
  %456 = vmatmul.mubr.bf16.gmra.mrb[0].mxu0 %v412
  %v457 = vpop.f32.mrb[0].mxu0
  %v458 = vadd.f32 %v353, %v457
  %v459 = vpop.f32.mrb[0].mxu0
  %v460 = vadd.f32 %v353, %v459
  %v461 = vpop.f32.mrb[0].mxu0
  %v462 = vadd.f32 %v358, %v461
  %v463 = vpop.f32.mrb[0].mxu0
  %v464 = vadd.f32 %v358, %v463
  %465 = vmatprep.mubr.bf16.mxu0 0
  %466 = vmatmul.mubr.bf16.gmra.mrb[0].mxu0 %v415
  %v467 = vpop.f32.mrb[0].mxu0
  %v468 = vadd.f32 %v363, %v467
  %v469 = vpop.f32.mrb[0].mxu0
  %v470 = vadd.f32 %v363, %v469
  %v471 = vpop.f32.mrb[0].mxu0
  %v472 = vadd.f32 %v368, %v471
  %v473 = vpop.f32.mrb[0].mxu0
  %v474 = vadd.f32 %v368, %v473
  %475 = vmatprep.mubr.bf16.mxu0 0
  %476 = vmatmul.mubr.bf16.gmra.mrb[0].mxu0 %v418
  %v477 = vpop.f32.mrb[0].mxu0
  %v478 = vadd.f32 %v373, %v477
  %v479 = vpop.f32.mrb[0].mxu0
  %v480 = vadd.f32 %v373, %v479
  %v481 = vpop.f32.mrb[0].mxu0
  %v482 = vadd.f32 %v378, %v481
  %v483 = vpop.f32.mrb[0].mxu0
  %v484 = vadd.f32 %v378, %v483
  %485 = vmatprep.mubr.bf16.mxu0 0
  %486 = vmatmul.mubr.bf16.gmra.mrb[0].mxu0 %v421
  %v487 = vpop.f32.mrb[0].mxu0
  %v488 = vadd.f32 %v383, %v487
  %v489 = vpop.f32.mrb[0].mxu0
  %v490 = vadd.f32 %v383, %v489
  %v491 = vpop.f32.mrb[0].mxu0
  %v492 = vadd.f32 %v388, %v491
  %v493 = vpop.f32.mrb[0].mxu0
  %v494 = vadd.f32 %v388, %v493
  %495 = vdwg.mxu0
  %496 = vmatprep.subr.bf16.mxu0 %v329
  %497 = vmatpush1.bf16.msra.mxu0 %v328
  %498 = vmatprep.subr.bf16.mxu0 %v333
  %499 = vmatpush1.bf16.msra.mxu0 %v332
  %500 = vmatprep.subr.bf16.mxu0 %v337
  %501 = vmatpush1.bf16.msra.mxu0 %v336
  %502 = vmatprep.subr.bf16.mxu0 %v341
  %503 = vmatpush1.bf16.msra.mxu0 %v340
  %504 = vmatprep.subr.bf16.mxu0 0
  %505 = vmatpush1.bf16.msra.mxu0 0
  %506 = vmatprep.subr.bf16.mxu0 0
  %507 = vmatpush1.bf16.msra.mxu0 0
  %508 = vmatprep.subr.bf16.mxu0 0
  %509 = vmatpush1.bf16.msra.mxu0 0
  %510 = vmatprep.subr.bf16.mxu0 0
  %511 = vmatpush1.bf16.msra.mxu0 0
  %512 = vmatprep.subr.bf16.mxu0 0
  %513 = vmatpush1.bf16.msra.mxu0 0
  %514 = vmatprep.subr.bf16.mxu0 0
  %515 = vmatpush1.bf16.msra.mxu0 0
  %516 = vmatprep.subr.bf16.mxu0 0
  %517 = vmatpush1.bf16.msra.mxu0 0
  %518 = vmatprep.subr.bf16.mxu0 0
  %519 = vmatpush1.bf16.msra.mxu0 0
  %520 = vmatprep.subr.bf16.mxu0 0
  %521 = vmatpush1.bf16.msra.mxu0 0
  %522 = vmatprep.subr.bf16.mxu0 0
  %523 = vmatpush1.bf16.msra.mxu0 0
  %524 = vmatprep.subr.bf16.mxu0 0
  %525 = vmatpush1.bf16.msra.mxu0 0
  %526 = vmatprep.subr.bf16.mxu0 0
  %527 = vmatpush1.bf16.msra.mxu0 0
  %528 = vmatprep.mubr.bf16.mxu0 0
  %529 = vmatmul.mubr.bf16.gmra.mrb[0].mxu0 %v412
  %v530 = vpop.f32.mrb[0].mxu0
  %v531 = vadd.f32 %v353, %v530
  %v532 = vpop.f32.mrb[0].mxu0
  %v533 = vadd.f32 %v353, %v532
  %v534 = vpop.f32.mrb[0].mxu0
  %v535 = vadd.f32 %v358, %v534
  %v536 = vpop.f32.mrb[0].mxu0
  %v537 = vadd.f32 %v358, %v536
  %538 = vmatprep.mubr.bf16.mxu0 0
  %539 = vmatmul.mubr.bf16.gmra.mrb[0].mxu0 %v415
  %v540 = vpop.f32.mrb[0].mxu0
  %v541 = vadd.f32 %v363, %v540
  %v542 = vpop.f32.mrb[0].mxu0
  %v543 = vadd.f32 %v363, %v542
  %v544 = vpop.f32.mrb[0].mxu0
  %v545 = vadd.f32 %v368, %v544
  %v546 = vpop.f32.mrb[0].mxu0
  %v547 = vadd.f32 %v368, %v546
  %548 = vmatprep.mubr.bf16.mxu0 0
  %549 = vmatmul.mubr.bf16.gmra.mrb[0].mxu0 %v418
  %v550 = vpop.f32.mrb[0].mxu0
  %v551 = vadd.f32 %v373, %v550
  %v552 = vpop.f32.mrb[0].mxu0
  %v553 = vadd.f32 %v373, %v552
  %v554 = vpop.f32.mrb[0].mxu0
  %v555 = vadd.f32 %v378, %v554
  %v556 = vpop.f32.mrb[0].mxu0
  %v557 = vadd.f32 %v378, %v556
  %558 = vmatprep.mubr.bf16.mxu0 0
  %559 = vmatmul.mubr.bf16.gmra.mrb[0].mxu0 %v421
  %v560 = vpop.f32.mrb[0].mxu0
  %v561 = vadd.f32 %v383, %v560
  %v562 = vpop.f32.mrb[0].mxu0
  %v563 = vadd.f32 %v383, %v562
  %v564 = vpop.f32.mrb[0].mxu0
  %v565 = vadd.f32 %v388, %v564
  %v566 = vpop.f32.mrb[0].mxu0
  %v567 = vadd.f32 %v388, %v566
  %568 = vdwg.mxu0
  %v569 = vmax.f32 %v458, 0.0
  %v570 = vmax.f32 %v460, 0.0
  %v571 = vmax.f32 %v531, 0.0
  %v572 = vmax.f32 %v533, 0.0
  %v573 = vmax.f32 %v462, 0.0
  %v574 = vmax.f32 %v464, 0.0
  %v575 = vmax.f32 %v535, 0.0
  %v576 = vmax.f32 %v537, 0.0
  %v577 = vmax.f32 %v468, 0.0
  %v578 = vmax.f32 %v470, 0.0
  %v579 = vmax.f32 %v541, 0.0
  %v580 = vmax.f32 %v543, 0.0
  %v581 = vmax.f32 %v472, 0.0
  %v582 = vmax.f32 %v474, 0.0
  %v583 = vmax.f32 %v545, 0.0
  %v584 = vmax.f32 %v547, 0.0
  %v585 = vmax.f32 %v478, 0.0
  %v586 = vmax.f32 %v480, 0.0
  %v587 = vmax.f32 %v551, 0.0
  %v588 = vmax.f32 %v553, 0.0
  %v589 = vmax.f32 %v482, 0.0
  %v590 = vmax.f32 %v484, 0.0
  %v591 = vmax.f32 %v555, 0.0
  %v592 = vmax.f32 %v557, 0.0
  %v593 = vmax.f32 %v488, 0.0
  %v594 = vmax.f32 %v490, 0.0
  %v595 = vmax.f32 %v561, 0.0
  %v596 = vmax.f32 %v563, 0.0
  %v597 = vmax.f32 %v492, 0.0
  %v598 = vmax.f32 %v494, 0.0
  %v599 = vmax.f32 %v565, 0.0
  %v600 = vmax.f32 %v567, 0.0
  %v601 = vld [vmem:[%s5] sm:$0xf]
  %v602 = vpack.c.bf16 %v573, %v569
  %v603 = vpack.c.bf16 %v574, %v570
  %v604 = vpack.c.bf16 %v575, %v571
  %v605 = vpack.c.bf16 %v576, %v572
  %v606 = vpack.c.bf16 %v581, %v577
  %v607 = vpack.c.bf16 %v582, %v578
  %v608 = vpack.c.bf16 %v583, %v579
  %v609 = vpack.c.bf16 %v584, %v580
  %v610 = vpack.c.bf16 %v589, %v585
  %v611 = vpack.c.bf16 %v590, %v586
  %v612 = vpack.c.bf16 %v591, %v587
  %v613 = vpack.c.bf16 %v592, %v588
  %v614 = vpack.c.bf16 %v597, %v593
  %v615 = vpack.c.bf16 %v598, %v594
  %v616 = vpack.c.bf16 %v599, %v595
  %v617 = vpack.c.bf16 %v600, %v596
  %v618 = vld [vmem:[%s6] sm:$0xff]
  %620 = vset.pattern.permute.xlu0 0
  %621 = vperm.xlu0 %620, %v618
  %v622 = vpop.permute.xlu0 %621
  %v625 = vsel %vm410, %v601, 0
  %627 = vmatprep.subr.bf16.mxu0 %v603
  %628 = vmatpush1.bf16.msra.mxu0 %v602
  %629 = vmatprep.subr.bf16.mxu0 %v607
  %630 = vmatpush1.bf16.msra.mxu0 %v606
  %631 = vmatprep.subr.bf16.mxu0 %v611
  %632 = vmatpush1.bf16.msra.mxu0 %v610
  %633 = vmatprep.subr.bf16.mxu0 %v615
  %634 = vmatpush1.bf16.msra.mxu0 %v614
  %635 = vmatprep.subr.bf16.mxu0 0
  %636 = vmatpush1.bf16.msra.mxu0 0
  %637 = vmatprep.subr.bf16.mxu0 0
  %638 = vmatpush1.bf16.msra.mxu0 0
  %639 = vmatprep.subr.bf16.mxu0 0
  %640 = vmatpush1.bf16.msra.mxu0 0
  %641 = vmatprep.subr.bf16.mxu0 0
  %642 = vmatpush1.bf16.msra.mxu0 0
  %643 = vmatprep.subr.bf16.mxu0 0
  %644 = vmatpush1.bf16.msra.mxu0 0
  %645 = vmatprep.subr.bf16.mxu0 0
  %646 = vmatpush1.bf16.msra.mxu0 0
  %647 = vmatprep.subr.bf16.mxu0 0
  %648 = vmatpush1.bf16.msra.mxu0 0
  %649 = vmatprep.subr.bf16.mxu0 0
  %650 = vmatpush1.bf16.msra.mxu0 0
  %651 = vmatprep.subr.bf16.mxu0 0
  %652 = vmatpush1.bf16.msra.mxu0 0
  %653 = vmatprep.subr.bf16.mxu0 0
  %654 = vmatpush1.bf16.msra.mxu0 0
  %655 = vmatprep.subr.bf16.mxu0 0
  %656 = vmatpush1.bf16.msra.mxu0 0
  %657 = vmatprep.subr.bf16.mxu0 0
  %658 = vmatpush1.bf16.msra.mxu0 0
  %659 = vmatprep.mubr.bf16.mxu0 0
  %660 = vmatmul.mubr.bf16.gmra.mrb[0].mxu0 %v625
  %v661 = vpop.f32.mrb[0].mxu0
  %v662 = vadd.f32 %v622, %v661
  %v663 = vpop.f32.mrb[0].mxu0
  %v664 = vadd.f32 %v622, %v663
  %v665 = vpop.f32.mrb[0].mxu0
  %v666 = vpop.f32.mrb[0].mxu0
  %667 = vdwg.mxu0
  %668 = vmatprep.subr.bf16.mxu0 %v605
  %669 = vmatpush1.bf16.msra.mxu0 %v604
  %670 = vmatprep.subr.bf16.mxu0 %v609
  %671 = vmatpush1.bf16.msra.mxu0 %v608
  %672 = vmatprep.subr.bf16.mxu0 %v613
  %673 = vmatpush1.bf16.msra.mxu0 %v612
  %674 = vmatprep.subr.bf16.mxu0 %v617
  %675 = vmatpush1.bf16.msra.mxu0 %v616
  %676 = vmatprep.subr.bf16.mxu0 0
  %677 = vmatpush1.bf16.msra.mxu0 0
  %678 = vmatprep.subr.bf16.mxu0 0
  %679 = vmatpush1.bf16.msra.mxu0 0
  %680 = vmatprep.subr.bf16.mxu0 0
  %681 = vmatpush1.bf16.msra.mxu0 0
  %682 = vmatprep.subr.bf16.mxu0 0
  %683 = vmatpush1.bf16.msra.mxu0 0
  %684 = vmatprep.subr.bf16.mxu0 0
  %685 = vmatpush1.bf16.msra.mxu0 0
  %686 = vmatprep.subr.bf16.mxu0 0
  %687 = vmatpush1.bf16.msra.mxu0 0
  %688 = vmatprep.subr.bf16.mxu0 0
  %689 = vmatpush1.bf16.msra.mxu0 0
  %690 = vmatprep.subr.bf16.mxu0 0
  %691 = vmatpush1.bf16.msra.mxu0 0
  %692 = vmatprep.subr.bf16.mxu0 0
  %693 = vmatpush1.bf16.msra.mxu0 0
  %694 = vmatprep.subr.bf16.mxu0 0
  %695 = vmatpush1.bf16.msra.mxu0 0
  %696 = vmatprep.subr.bf16.mxu0 0
  %697 = vmatpush1.bf16.msra.mxu0 0
  %698 = vmatprep.subr.bf16.mxu0 0
  %699 = vmatpush1.bf16.msra.mxu0 0
  %700 = vmatprep.mubr.bf16.mxu0 0
  %701 = vmatmul.mubr.bf16.gmra.mrb[0].mxu0 %v625
  %v702 = vpop.f32.mrb[0].mxu0
  %v703 = vadd.f32 %v622, %v702
  %v704 = vpop.f32.mrb[0].mxu0
  %v705 = vadd.f32 %v622, %v704
  %v706 = vpop.f32.mrb[0].mxu0
  %v707 = vpop.f32.mrb[0].mxu0
  %708 = vdwg.mxu0
  %v709 = vtanh.pop %v662
  %v710 = vtanh.pop %v664
  %v711 = vtanh.pop %v703
  %v712 = vtanh.pop %v705
  %713 = vst [vmem:[%s7] sm:$0xff] %v709
  %714 = vst [vmem:[%s7 + $0x8] sm:$0xff] %v710
  %715 = vst [vmem:[%s7 + $0x10] sm:$0xff] %v711
  %716 = vst [vmem:[%s7 + $0x18] sm:$0xff] %v712
  // Predicated region
  $region30: #{policy_network_forward.1} parent=0 // pred_check
    _
  $region31: #{policy_network_forward.1} parent=0 // pred_check_branch
    %718 = sbr.rel (0) target = $region33
  $region32: #{policy_network_forward.1} parent=0 // pred_region
    _
  $region33: #{policy_network_forward.1} parent=0 // pred_fallthru
    _
  // Predicated region
  $region34: #{policy_network_forward.1} parent=0 // pred_check
    _
  $region35: #{policy_network_forward.1} parent=0 // pred_check_branch
    %720 = sbr.rel (0) target = $region37
  $region36: #{policy_network_forward.1} parent=0 // pred_region
    _
  $region37: #{policy_network_forward.1} parent=0 // pred_fallthru
    _

</llo_original>
